<compile_context>
chip_gen: v7x
topology: tpu7x:2x2x1
jax: 0.10.0
libtpu: 0.0.40
codegen_flags: <defaults>
</compile_context>

<pallas_src>
import jax
import jax.numpy as jnp
from jax.experimental import pallas as pl
from jax.experimental.pallas import tpu as pltpu


def _identity_kernel(x_ref, o_ref):
    # Pure VMEM tile copy (vld -> vst); all movement is DMA + full-width stores.
    o_ref[...] = x_ref[...]


def _tpu_generation():
    try:
        kind = jax.devices()[0].device_kind.lower()
    except Exception:
        return None
    for gen in ("v7", "v6", "v5"):
        if gen in kind:
            return gen
    return None


def _block_budget():
    """Return (target block bytes, split-for-two-TensorCores?) per generation."""
    gen = _tpu_generation()
    if gen == "v7":
        # ~3.2 TB/s HBM per TC: 8 MiB blocks amortize the ~0.35 us step
        # overhead to <5%; 4x8 MiB + slack still fits the 64 MiB VMEM.
        return 8 << 20, True
    if gen == "v6":
        # ~85-86% of roofline already at 2 MiB; 4 MiB buys a little more.
        return 4 << 20, False
    # v5e / v5p / unknown: conservative (v5e default scoped VMEM is 16 MiB).
    return 2 << 20, False


def _lane_dense_layout(total, itemsize, block_bytes):
    """Pick (rows, cols): cols a large multiple of 128 dividing total, capped so
    that even the minimum 8-row tile fits within block_bytes."""
    if total % 128 != 0:
        return None
    max_cols = max(128, block_bytes // (8 * itemsize))
    cols = 128
    while total % (cols * 2) == 0 and (cols * 2) <= max_cols:
        cols *= 2
    return total // cols, cols


def _pick_tile_rows(rows, cols, itemsize, block_bytes, split_for_two_cores):
    """Byte-capped row tile; multiple of 8 unless it is the full row extent."""
    if rows <= 8:
        return rows  # whole-array block (block_shape == array shape is legal)
    cap = max(8, (block_bytes // (cols * itemsize) // 8) * 8)
    tile = rows if rows <= cap else cap
    # v7x only: make sure larger arrays get >=2 grid steps so both TCs stream.
    if split_for_two_cores and tile == rows and rows * cols * itemsize >= (4 << 20):
        half = ((rows // 2) // 8) * 8
        if half >= 8:
            tile = half
    return tile


def _pallas_identity_copy(x):
    """Materialized identity copy (distinct output buffer) via a Pallas kernel."""
    orig_shape = x.shape
    total = x.size
    if total == 0:
        return x
    itemsize = jnp.dtype(x.dtype).itemsize
    block_bytes, two_cores = _block_budget()

    layout = _lane_dense_layout(total, itemsize, block_bytes)
    if layout is None:
        # total not a multiple of 128: a Pallas copy would be lane-sparse
        # (masked vst / strided DMA); a plain XLA copy is faster on all gens.
        return jnp.copy(x)

    rows, cols = layout
    x2 = x.reshape(rows, cols)
    tile_rows = _pick_tile_rows(rows, cols, itemsize, block_bytes, two_cores)
    grid = (pl.cdiv(rows, tile_rows),)

    actual_block_bytes = tile_rows * cols * itemsize
    # in + out, double-buffered = 4x block; add slack, keep a sane floor.
    vmem_limit = max(16 << 20, 4 * actual_block_bytes + (2 << 20))

    out2 = pl.pallas_call(
        _identity_kernel,
        out_shape=jax.ShapeDtypeStruct((rows, cols), x2.dtype),
        grid_spec=pltpu.PrefetchScalarGridSpec(
            num_scalar_prefetch=0,
            grid=grid,
            in_specs=[pl.BlockSpec((tile_rows, cols), lambda i: (i, 0))],
            out_specs=pl.BlockSpec((tile_rows, cols), lambda i: (i, 0)),
        ),
        cost_estimate=pl.CostEstimate(
            flops=0,
            transcendentals=0,
            bytes_accessed=2 * total * itemsize,
        ),
        compiler_params=pltpu.CompilerParams(
            dimension_semantics=("parallel",),
            vmem_limit_bytes=vmem_limit,
        ),
    )(x2)
    return out2.reshape(orig_shape)


class NoNorm:
    """Pallas equivalent of MeshCNN's NoNorm: identity, no parameters.

    Default forward returns `x` directly (the optimal identity: zero HBM
    traffic, zero launch). Set `materialize_copy=True` to route through the
    Pallas copy kernel and get a distinct, freshly materialized buffer.
    """

    def __init__(self, fake=True, materialize_copy=False):
        self.fake = fake
        self.materialize_copy = materialize_copy

    def forward(self, x):
        if self.materialize_copy:
            return _pallas_identity_copy(x)
        return x  # true no-op, same as the PyTorch module

    def __call__(self, x):
        return self.forward(x)


if __name__ == "__main__":
    key = jax.random.PRNGKey(0)
    # NCHW, small shapes: batch=2, channels=4, spatial=16x16
    x = jax.random.normal(key, (2, 4, 16, 16), dtype=jnp.float32)

    # Default (optimal) path: pure no-op identity.
    y_fast = NoNorm()(x)
    y_fast = jax.block_until_ready(y_fast)
    assert y_fast.shape == x.shape and y_fast.dtype == x.dtype
    assert bool(jnp.array_equal(y_fast, x))

    # Pallas kernel path: real copy into a fresh buffer, validated on TPU.
    y_kernel = NoNorm(materialize_copy=True)(x)
    y_kernel = jax.block_until_ready(y_kernel)
    assert y_kernel.shape == x.shape and y_kernel.dtype == x.dtype
    assert bool(jnp.array_equal(y_kernel, x))

    print("KERNEL_OK")
</pallas_src>

<mosaic_0001>
module attributes {stable_mosaic.version = 11 : i64} {
  func.func @_identity_kernel(%arg0: i32, %arg1: memref<1x2048xf32, #tpu.memory_space<vmem>>, %arg2: memref<1x2048xf32, #tpu.memory_space<vmem>>) attributes {dimension_semantics = [#tpu.dimension_semantics<parallel>], iteration_bounds = array<i64: 1>, scalar_prefetch = 0 : i64, scratch_operands = 0 : i64, tpu.core_type = #tpu.core_type<tc>, window_params = [{transform_indices = @transform_0, window_bounds = array<i64: 1, 2048>}, {transform_indices = @transform_1, window_bounds = array<i64: 1, 2048>}]} {
    %c0 = arith.constant 0 : index
    %c0_0 = arith.constant 0 : index
    %0 = vector.load %arg1[%c0, %c0_0] : memref<1x2048xf32, #tpu.memory_space<vmem>>, vector<1x2048xf32>
    %c0_1 = arith.constant 0 : index
    %c0_2 = arith.constant 0 : index
    %1 = vector.load %arg2[%c0_1, %c0_2] : memref<1x2048xf32, #tpu.memory_space<vmem>>, vector<1x2048xf32>
    tpu.vector_store %arg2[%c0_1, %c0_2], %0 {strides = array<i32>} : memref<1x2048xf32, #tpu.memory_space<vmem>>, vector<1x2048xf32>,
    return
  }
  func.func @transform_0(%arg0: i32) -> (i32, i32) {
    %c0_i32 = arith.constant 0 : i32
    %c0_i32_0 = arith.constant 0 : i32
    return %arg0, %c0_i32 : i32, i32
  }
  func.func @transform_1(%arg0: i32) -> (i32, i32) {
    %c0_i32 = arith.constant 0 : i32
    %c0_i32_0 = arith.constant 0 : i32
    return %arg0, %c0_i32 : i32, i32
  }
}

</mosaic_0001>

<llo_original>
// kernel: tpu_custom_call.1
$region0: #{tpu_custom_call.1}
  #allocation0 [shape = 'u32[]', space=smem, size = 0x4, offset = 0x4, fixed_abs, tag = 'smem constant byte address 0x4 - core index']
  #allocation1 [shape = 'u32[144,128]{1,0:T(1,128)}', space=vmem, size = 0x12000, scoped, tag = 'internal scratch']
  %s0 = inlined_call_operand.hbm [shape: f32[1,2048], index: 0, kind: input, shape index: {}]
  %s1 = inlined_call_operand.hbm [shape: f32[1,2048], index: 1, kind: output, shape index: {}]
  %s2 = sld [smem:[#allocation0]]
  $region18: #{tpu_custom_call.1} parent=0
    _
  %s4 = ssub.s32 1, %s2
  %s5 = scalar_select 0, %s4, %s2
  $region1: #{tpu_custom_call.1} parent=0
    #allocation2 [shape = 'u8[8192]{0}', space=vmem, size = 0x2000, scoped, tag = 'input window, operand 0, single buffered']
    #allocation3 [shape = 's32[1]{0}', space=sflag, size = 0x4, scoped, tag = 'scoped memory for tpu_custom_call.1']
    #allocation4 [shape = 's32[1]{0}', space=sflag, size = 0x4, scoped, tag = 'scoped memory for tpu_custom_call.1']
    #allocation5 [shape = 'u8[8192]{0}', space=vmem, size = 0x2000, scoped, tag = 'output window, operand 0, single buffered']
    %6 = vsyncpa [#allocation3], 0
    %7 = vsyncpa [#allocation4], 0
    // Predicated region
    $region2: #{tpu_custom_call.1} parent=1 // pred_check
      _
    $region3: #{tpu_custom_call.1} parent=1 // pred_check_branch
      %9 = sbr.rel (0) target = $region5
    $region4: #{tpu_custom_call.1} parent=1 // pred_region
      %s11 = ssub.s32 256, 256
      %12 = vsyncadd [#allocation3], %s11
      %s14 = sshll.u32 [#allocation2], 4
      %s15 = int_to_ptr.vmem [resolvable:$true] %s14
      %17 = dma.hbm_to_vmem [thread:$0]  %s0, 256, %s15, [#allocation3]
    $region5: #{tpu_custom_call.1} parent=1 // pred_fallthru
      _
    // Predicated region
    $region6: #{tpu_custom_call.1} parent=1 // pred_check
      _
    $region7: #{tpu_custom_call.1} parent=1 // pred_check_branch
      %19 = sbr.rel (0) target = $region9
    $region8: #{tpu_custom_call.1} parent=1 // pred_region
      %20 = dma.done [#allocation3], 256
    $region9: #{tpu_custom_call.1} parent=1 // pred_fallthru
      _
    %v21 = vld [vmem:[#allocation2] sm:$0xff]
    %v22 = vld [vmem:[#allocation2 + $0x8] sm:$0xff]
    %23 = vst [vmem:[#allocation5] sm:$0xff] %v21
    %24 = vst [vmem:[#allocation5 + $0x8] sm:$0xff] %v22
    // Predicated region
    $region10: #{tpu_custom_call.1} parent=1 // pred_check
      _
    $region11: #{tpu_custom_call.1} parent=1 // pred_check_branch
      %26 = sbr.rel (0) target = $region13
    $region12: #{tpu_custom_call.1} parent=1 // pred_region
      %s28 = ssub.s32 256, 256
      %29 = vsyncadd [#allocation4], %s28
      %s31 = sshll.u32 [#allocation5], 4
      %s32 = int_to_ptr.vmem [resolvable:$true] %s31
      %34 = dma.vmem_to_hbm [thread:$0]  %s32, 256, %s1, [#allocation4]
    $region13: #{tpu_custom_call.1} parent=1 // pred_fallthru
      _
    // Predicated region
    $region14: #{tpu_custom_call.1} parent=1 // pred_check
      _
    $region15: #{tpu_custom_call.1} parent=1 // pred_check_branch
      %36 = sbr.rel (0) target = $region17
    $region16: #{tpu_custom_call.1} parent=1 // pred_region
      %37 = dma.done [#allocation4], 256
    $region17: #{tpu_custom_call.1} parent=1 // pred_fallthru
      _
    %38 = vsyncpa [#allocation3], 1
    %39 = vsyncpa [#allocation4], 1

</llo_original>
